<compile_context>
chip_gen: v7x
topology: tpu7x:2x2x1
jax: 0.10.0
libtpu: 0.0.40
codegen_flags: <defaults>
</compile_context>

<pallas_src>
import functools

import jax
import jax.numpy as jnp
from jax.experimental import pallas as pl
from jax.experimental.pallas import tpu as pltpu


# -----------------------------------------------------------------------------
# helpers
# -----------------------------------------------------------------------------
def _vmem_limit_bytes():
    # generation-aware scoped-VMEM limit (~60% of per-core physical VMEM)
    try:
        cap = int(pltpu.get_tpu_info().vmem_capacity_bytes)
    except Exception:                                   # pragma: no cover
        cap = 64 * 1024 * 1024
    return max(32 * 1024 * 1024, min(int(cap * 0.6), 96 * 1024 * 1024))


def _pick_th(h):
    # largest row-band height that still gives >= 2 bands (keeps DMA/compute
    # overlap in the per-image pipeline); falls back to full height.
    for cand in (56, 28, 16, 14, 8):
        if h % cand == 0 and h // cand >= 2:
            return cand
    return h


# -----------------------------------------------------------------------------
# Pallas kernel: fused halo-DMA 3x3 conv + bias + ReLU (VGG conv layers, cin>=8)
#   - per-image double-buffered row-band (2-row halo) manual DMA HBM->VMEM
#   - dx taps folded into the contraction: 3 dots of K=3*cin (instead of 9)
# -----------------------------------------------------------------------------
def _conv3x3_kernel(x_hbm, w_ref, b_ref, o_ref, xbuf, sem, *,
                    th, w, w_c, cin, cout, n_rows):
    ni = pl.program_id(0)          # image index  ("parallel")
    r = pl.program_id(1)           # row-band index within the image
    slot = r % 2

    def _issue(row, sl):
        pltpu.make_async_copy(
            x_hbm.at[ni, pl.ds(row * th, th + 2)],
            xbuf.at[sl], sem.at[sl]).start()

    # prime the pipeline at the first band of every image
    @pl.when(r == 0)
    def _():
        _issue(0, 0)

    # prefetch the next band of the SAME image into the other slot
    @pl.when(r + 1 < n_rows)
    def _():
        _issue(r + 1, 1 - slot)

    # wait for the current band
    pltpu.make_async_copy(
        x_hbm.at[ni, pl.ds(r * th, th + 2)],
        xbuf.at[slot], sem.at[slot]).wait()

    x = xbuf[slot]                                     # (th+2, w_c+2, cin) bf16
    acc = None
    for dy in range(3):
        xs = x[dy:dy + th]                             # major-dim slice (cheap)
        a = jnp.concatenate(                           # fold dx into K
            [xs[:, 0:w_c, :], xs[:, 1:w_c + 1, :], xs[:, 2:w_c + 2, :]],
            axis=-1).reshape(th * w_c, 3 * cin)
        d = jnp.dot(a, w_ref[dy], preferred_element_type=jnp.float32)
        acc = d if acc is None else acc + d            # init from first dot

    y = jnp.maximum(acc + b_ref[...], 0.0)             # f32 bias + ReLU epilogue
    y = y.reshape(th, w_c, cout)
    if w_c != w:                                       # drop compute-pad columns
        y = y[:, :w, :]
    o_ref[0] = y.astype(o_ref.dtype)


def conv3x3_relu(x_nhwc, w4, bvec):
    """3x3 conv, padding=1, stride=1, fused ReLU (cin >= 8).
    x: (N,H,W,Cin); w4: (3,3,Cin,Cout) bf16; bvec: (1,Cout) f32."""
    n, h, w, cin = x_nhwc.shape
    cout = w4.shape[-1]
    assert cin % 8 == 0, cin
    th = _pick_th(h)
    assert h % th == 0, (h, th)
    w_c = ((w + 7) // 8) * 8                           # sublane-aligned width
    n_rows = h // th

    xp = jnp.pad(x_nhwc.astype(jnp.bfloat16),
                 ((0, 0), (1, 1), (1, 1 + (w_c - w)), (0, 0)))
    w3 = w4.reshape(3, 3 * cin, cout).astype(jnp.bfloat16)   # (dy, dx*cin, cout)

    kern = functools.partial(_conv3x3_kernel, th=th, w=w, w_c=w_c,
                             cin=cin, cout=cout, n_rows=n_rows)
    # TODO(synk): weights/bias are constant-indexed but still default
    # double-buffered; pin to a single buffer once pl.Buffered(1) is validated.
    return pl.pallas_call(
        kern,
        out_shape=jax.ShapeDtypeStruct((n, h, w, cout), jnp.bfloat16),
        grid_spec=pltpu.PrefetchScalarGridSpec(
            num_scalar_prefetch=0,
            grid=(n, n_rows),
            in_specs=[
                pl.BlockSpec(memory_space=pl.ANY),                       # raw HBM act
                pl.BlockSpec((3, 3 * cin, cout), lambda i, r: (0, 0, 0)),  # weights
                pl.BlockSpec((1, cout), lambda i, r: (0, 0)),              # bias
            ],
            out_specs=pl.BlockSpec((1, th, w, cout), lambda i, r: (i, r, 0, 0)),
            scratch_shapes=[
                pltpu.VMEM((2, th + 2, w_c + 2, cin), jnp.bfloat16),     # halo dbuf
                pltpu.SemaphoreType.DMA((2,)),
            ]),
        compiler_params=pltpu.CompilerParams(
            dimension_semantics=("parallel", "arbitrary"),
            vmem_limit_bytes=_vmem_limit_bytes()),
    )(xp, w3, bvec)


# -----------------------------------------------------------------------------
# Pallas kernel: first VGG conv (cin=3) — wrapper-side im2col, pointwise matmul
# -----------------------------------------------------------------------------
def _im2col_matmul_relu_kernel(a_ref, w_ref, b_ref, o_ref, *, th, w, cout):
    a = a_ref[0].reshape(th * w, -1)                   # (th*w, kp) bf16
    y = jnp.dot(a, w_ref[...], preferred_element_type=jnp.float32) + b_ref[...]
    o_ref[0] = jnp.maximum(y, 0.0).reshape(th, w, cout).astype(o_ref.dtype)


def conv3x3_relu_small_cin(x_nhwc, w4, bvec):
    """conv1_1 (cin=3): 9-tap im2col in the wrapper (K=27->32), then a
    Pallas matmul+bias+ReLU.  Avoids the cin=3 lane-padding pathology."""
    n, h, w, cin = x_nhwc.shape
    cout = w4.shape[-1]
    th = _pick_th(h)
    assert h % th == 0, (h, th)

    xp = jnp.pad(x_nhwc.astype(jnp.bfloat16), ((0, 0), (1, 1), (1, 1), (0, 0)))
    cols = [xp[:, dy:dy + h, dx:dx + w, :] for dy in range(3) for dx in range(3)]
    a = jnp.concatenate(cols, axis=-1)                 # (n, h, w, 9*cin)
    k = 9 * cin
    kp = ((k + 7) // 8) * 8
    if kp != k:
        a = jnp.pad(a, ((0, 0), (0, 0), (0, 0), (0, kp - k)))
    wk = w4.reshape(k, cout)
    if kp != k:
        wk = jnp.pad(wk, ((0, kp - k), (0, 0)))
    wk = wk.astype(jnp.bfloat16)

    kern = functools.partial(_im2col_matmul_relu_kernel, th=th, w=w, cout=cout)
    return pl.pallas_call(
        kern,
        out_shape=jax.ShapeDtypeStruct((n, h, w, cout), jnp.bfloat16),
        grid_spec=pltpu.PrefetchScalarGridSpec(
            num_scalar_prefetch=0,
            grid=(n, h // th),
            in_specs=[
                pl.BlockSpec((1, th, w, kp), lambda i, r: (i, r, 0, 0)),
                pl.BlockSpec((kp, cout), lambda i, r: (0, 0)),
                pl.BlockSpec((1, cout), lambda i, r: (0, 0)),
            ],
            out_specs=pl.BlockSpec((1, th, w, cout), lambda i, r: (i, r, 0, 0))),
        compiler_params=pltpu.CompilerParams(
            dimension_semantics=("parallel", "arbitrary"),
            vmem_limit_bytes=_vmem_limit_bytes()),
    )(a, wk, bvec)


def maxpool2x2(x_nhwc):
    # cheap glue (reshape + max); not the hot path
    n, h, w, c = x_nhwc.shape
    return jnp.max(x_nhwc.reshape(n, h // 2, 2, w // 2, 2, c), axis=(2, 4))


# -----------------------------------------------------------------------------
# Pallas kernel: gram matrix from NHWC features
#   gram[b,i,j] = sum_hw f[b,hw,i] * f[b,hw,j] / (ch*h*w)
# -----------------------------------------------------------------------------
def _gram_kernel(f_ref, o_ref, acc_ref, *, scale):
    @pl.when(pl.program_id(1) == 0)
    def _():
        acc_ref[...] = jnp.zeros_like(acc_ref)

    f = f_ref[0]                                       # (tk, ch) bf16
    acc_ref[...] += jax.lax.dot_general(
        f, f, dimension_numbers=(((0,), (0,)), ((), ())),
        preferred_element_type=jnp.float32)

    @pl.when(pl.program_id(1) == pl.num_programs(1) - 1)
    def _():
        o_ref[0] = acc_ref[...] * scale


def gram_matrix(y_nhwc):
    b, h, w, ch = y_nhwc.shape
    hw = h * w
    f = y_nhwc.reshape(b, hw, ch)

    bytes_per_row = ch * jnp.dtype(f.dtype).itemsize   # ~2 MiB K-blocks
    steps = max(1, -(-(hw * bytes_per_row) // (2 * 1024 * 1024)))
    tk = -(-hw // steps)
    tk = -(-tk // 8) * 8
    hwp = steps * tk
    if hwp != hw:
        f = jnp.pad(f, ((0, 0), (0, hwp - hw), (0, 0)))

    scale = 1.0 / float(ch * h * w)
    return pl.pallas_call(
        functools.partial(_gram_kernel, scale=scale),
        out_shape=jax.ShapeDtypeStruct((b, ch, ch), jnp.float32),
        grid_spec=pltpu.PrefetchScalarGridSpec(
            num_scalar_prefetch=0,
            grid=(b, steps),
            in_specs=[pl.BlockSpec((1, tk, ch), lambda bi, ki: (bi, ki, 0))],
            out_specs=pl.BlockSpec((1, ch, ch), lambda bi, ki: (bi, 0, 0)),
            scratch_shapes=[pltpu.VMEM((ch, ch), jnp.float32)]),
        compiler_params=pltpu.CompilerParams(
            dimension_semantics=("parallel", "arbitrary")),
    )(f)


# -----------------------------------------------------------------------------
# Pallas kernel: sum of squared differences (relu2_2 content-MSE numerator)
# -----------------------------------------------------------------------------
_SSD_TR, _SSD_TC = 256, 1024


def _ssd_kernel(x_ref, y_ref, o_ref, acc_ref):
    @pl.when(pl.program_id(0) == 0)
    def _():
        acc_ref[...] = jnp.zeros_like(acc_ref)

    d = x_ref[...].astype(jnp.float32) - y_ref[...].astype(jnp.float32)
    acc_ref[...] += d * d

    @pl.when(pl.program_id(0) == pl.num_programs(0) - 1)
    def _():
        o_ref[...] = jnp.sum(acc_ref[...], keepdims=True)


def sum_sq_diff(x, y):
    dt = jnp.bfloat16 if (x.dtype == jnp.bfloat16 and y.dtype == jnp.bfloat16) \
        else jnp.float32
    xf = x.reshape(-1).astype(dt)
    yf = y.reshape(-1).astype(dt)
    n = xf.shape[0]
    tile = _SSD_TR * _SSD_TC
    npad = pl.cdiv(n, tile) * tile
    if npad != n:
        xf = jnp.pad(xf, (0, npad - n))
        yf = jnp.pad(yf, (0, npad - n))
    x2 = xf.reshape(-1, _SSD_TC)
    y2 = yf.reshape(-1, _SSD_TC)
    steps = npad // tile
    out = pl.pallas_call(
        _ssd_kernel,
        out_shape=jax.ShapeDtypeStruct((1, 1), jnp.float32),
        grid_spec=pltpu.PrefetchScalarGridSpec(
            num_scalar_prefetch=0,
            grid=(steps,),
            in_specs=[pl.BlockSpec((_SSD_TR, _SSD_TC), lambda i: (i, 0)),
                      pl.BlockSpec((_SSD_TR, _SSD_TC), lambda i: (i, 0))],
            out_specs=pl.BlockSpec((1, 1), lambda i: (0, 0)),
            scratch_shapes=[pltpu.VMEM((_SSD_TR, _SSD_TC), jnp.float32)]),
        compiler_params=pltpu.CompilerParams(dimension_semantics=("arbitrary",)),
    )(x2, y2)
    return out[0, 0]


# -----------------------------------------------------------------------------
# Pallas kernels: fused rgb (masked L1) + mask (masked BCE-with-logits), eikonal
# -----------------------------------------------------------------------------
def _pixel_losses_kernel(rgb_ref, gt_ref, mrgb_ref, sdf_ref, ogt_ref, mbce_ref,
                         l1_ref, bce_ref, *, alpha):
    l1_ref[...] = jnp.sum(jnp.abs(rgb_ref[...] - gt_ref[...]) * mrgb_ref[...],
                          keepdims=True)
    x = -alpha * sdf_ref[...]
    gt = ogt_ref[...]
    # numerically stable BCE-with-logits
    bce = jnp.maximum(x, 0.0) - x * gt + jnp.log(1.0 + jnp.exp(-jnp.abs(x)))
    bce_ref[...] = jnp.sum(bce * mbce_ref[...], keepdims=True)


def rgb_and_mask_losses(rgb_values, rgb_gt, sdf_output,
                        network_object_mask, object_mask, alpha):
    n = object_mask.shape[0]
    gt = rgb_gt.reshape(-1, 3).astype(jnp.float32)
    both = network_object_mask & object_mask
    m_rgb = both.astype(jnp.float32).reshape(-1, 1)
    m_bce = (~both).astype(jnp.float32).reshape(-1, 1)
    obj_f = object_mask.astype(jnp.float32).reshape(-1, 1)
    l1, bce = pl.pallas_call(
        functools.partial(_pixel_losses_kernel, alpha=float(alpha)),
        out_shape=(jax.ShapeDtypeStruct((1, 1), jnp.float32),
                   jax.ShapeDtypeStruct((1, 1), jnp.float32)),
    )(rgb_values.astype(jnp.float32), gt, m_rgb,
      sdf_output.astype(jnp.float32), obj_f, m_bce)
    rgb_loss = l1[0, 0] / float(n)
    mask_loss = (1.0 / float(alpha)) * bce[0, 0] / float(n)
    return rgb_loss, mask_loss


def _eikonal_kernel(g_ref, o_ref):
    g = g_ref[...]
    norm = jnp.sqrt(jnp.sum(g * g, axis=1, keepdims=True))
    o_ref[...] = jnp.sum((norm - 1.0) ** 2, keepdims=True)


def eikonal_loss_fn(grad_theta):
    m = grad_theta.shape[0]
    if m == 0:
        return jnp.float32(0.0)
    s = pl.pallas_call(
        _eikonal_kernel,
        out_shape=jax.ShapeDtypeStruct((1, 1), jnp.float32),
    )(grad_theta.astype(jnp.float32))
    return s[0, 0] / float(m)


# -----------------------------------------------------------------------------
# VGG16 (synthetic, deterministic weights) up to relu4_3, NHWC end-to-end
# -----------------------------------------------------------------------------
_VGG_CFG = [
    ("conv", 3, 64), ("conv", 64, 64), ("relu1_2",),
    ("pool",), ("conv", 64, 128), ("conv", 128, 128), ("relu2_2",),
    ("pool",), ("conv", 128, 256), ("conv", 256, 256), ("conv", 256, 256), ("relu3_3",),
    ("pool",), ("conv", 256, 512), ("conv", 512, 512), ("conv", 512, 512), ("relu4_3",),
]


def init_vgg_params(key):
    # TODO(synk): real IDRLoss uses torchvision-pretrained VGG16 weights; here they
    # are deterministic He-style random params of identical shapes, stored as
    # (kh, kw, cin, cout) bf16 + (1, cout) f32 bias.
    params = []
    for entry in _VGG_CFG:
        if entry[0] == "conv":
            _, cin, cout = entry
            key, sub = jax.random.split(key)
            w = jax.random.normal(sub, (cout, cin, 3, 3), jnp.float32) * jnp.sqrt(
                2.0 / (9.0 * cin))
            w4 = jnp.transpose(w, (2, 3, 1, 0))          # (kh, kw, cin, cout)
            params.append((w4.astype(jnp.bfloat16),
                           jnp.zeros((1, cout), jnp.float32)))
    return params


def vgg16_features(x_nhwc, params):
    x = x_nhwc.astype(jnp.bfloat16)
    feats = {}
    pi = 0
    for entry in _VGG_CFG:
        if entry[0] == "conv":
            w4, bvec = params[pi]
            pi += 1
            if w4.shape[2] < 8:                        # conv1_1
                x = conv3x3_relu_small_cin(x, w4, bvec)
            else:
                x = conv3x3_relu(x, w4, bvec)
        elif entry[0] == "pool":
            x = maxpool2x2(x)
        else:
            feats[entry[0]] = x                        # NHWC bf16 feature map
    return feats


def interpolate_nearest(x_nhwc, size=(224, 224)):
    # F.interpolate(batch, size) default mode == 'nearest' (reference ignores 'bilinear')
    n, h, w, c = x_nhwc.shape
    oh, ow = size
    ri = (jnp.arange(oh) * h) // oh
    ci = (jnp.arange(ow) * w) // ow
    return x_nhwc[:, ri[:, None], ci[None, :], :]


_IMAGENET_MEAN = jnp.array([0.485, 0.456, 0.406], jnp.float32).reshape(1, 1, 1, 3)
_IMAGENET_STD = jnp.array([0.229, 0.224, 0.225], jnp.float32).reshape(1, 1, 1, 3)


def normalize_batch(x_nhwc):
    return (x_nhwc / 255.0 - _IMAGENET_MEAN) / _IMAGENET_STD


# -----------------------------------------------------------------------------
# IDRLoss
# -----------------------------------------------------------------------------
class IDRLossPallas:
    def __init__(self, rgb_weight, eikonal_weight, mask_weight, alpha,
                 perceptual_weight, content_weight, style_weight, vgg_params):
        self.rgb_weight = float(rgb_weight)
        self.eikonal_weight = float(eikonal_weight)
        self.mask_weight = float(mask_weight)
        self.alpha = float(alpha)
        self.perceptual_weight = float(perceptual_weight)
        self.content_weight = float(content_weight)
        self.style_weight = float(style_weight)
        self.vgg_params = vgg_params

    def get_style_loss(self, img_res, rgb_values, rgb_gt, style_img, object_mask):
        bs = rgb_gt.shape[0]
        rgb_pred = jnp.clip(rgb_values.reshape(bs, img_res, img_res, -1) * 255.0,
                            0.0, 255.0)
        target_s = jnp.clip(rgb_gt.reshape(bs, img_res, img_res, -1) * 255.0,
                            0.0, 255.0)
        style_s = jnp.clip(style_img * 255.0, 0.0, 255.0)
        mask = jnp.clip(object_mask.astype(jnp.float32)
                        .reshape(bs, img_res, img_res, 1), 0.0, 1.0)

        _rgb_pred = interpolate_nearest(rgb_pred)
        _target_s = interpolate_nearest(target_s)
        _style_s = interpolate_nearest(style_s)
        _mask = interpolate_nearest(mask)

        # Batch pred / gt / style through the VGG in ONE pass (stacked batch).
        stacked = jnp.concatenate([normalize_batch(_rgb_pred) * _mask,
                                   normalize_batch(_target_s) * _mask,
                                   normalize_batch(_style_s)], axis=0)
        feats = vgg16_features(stacked, self.vgg_params)

        pred_sl = slice(0, bs)
        gt_sl = slice(bs, 2 * bs)
        style_idx = 2 * bs

        f22 = feats["relu2_2"]
        content_loss = sum_sq_diff(f22[gt_sl], f22[pred_sl]) / float(f22[gt_sl].size)

        style_loss = jnp.float32(0.0)
        for k in ("relu1_2", "relu2_2", "relu3_3", "relu4_3"):
            gm_all = gram_matrix(feats[k])                       # (N, ch, ch) f32
            gm_y = gm_all[pred_sl]
            gm_s1 = jnp.broadcast_to(gm_all[style_idx:style_idx + 1], gm_y.shape)
            # gram MSEs are tiny (<= 512x512 f32) -> plain jnp, no padded tiles
            style_loss = style_loss + jnp.mean((gm_y - gm_s1) ** 2)
        return content_loss, style_loss

    def __call__(self, model_outputs, ground_truth):
        rgb_gt = ground_truth["rgb"]
        network_object_mask = model_outputs["network_object_mask"]
        object_mask = model_outputs["object_mask"]

        rgb_loss, mask_loss = rgb_and_mask_losses(
            model_outputs["rgb_values"], rgb_gt, model_outputs["sdf_output"],
            network_object_mask, object_mask, self.alpha)
        eikonal_loss = eikonal_loss_fn(model_outputs["grad_theta"])

        content_loss = jnp.float32(0.0)
        style_loss = jnp.float32(0.0)
        if ground_truth.get("style_img") is not None:
            img_res = ground_truth["img_res"]
            style_img = ground_truth["style_img"]
            content_loss, style_loss = self.get_style_loss(
                img_res, model_outputs["rgb_values"], rgb_gt, style_img, object_mask)

        loss = (self.rgb_weight * rgb_loss
                + self.eikonal_weight * eikonal_loss
                + self.mask_weight * mask_loss
                + self.perceptual_weight * self.content_weight * content_loss
                + self.perceptual_weight * self.style_weight * style_loss)
        return {
            "loss": loss,
            "rgb_loss": rgb_loss,
            "eikonal_loss": eikonal_loss,
            "mask_loss": mask_loss,
            "content_loss": content_loss,
            "style_loss": style_loss,
        }


# -----------------------------------------------------------------------------
if __name__ == "__main__":
    key = jax.random.PRNGKey(0)
    k_vgg, k1, k2, k3, k4, k5, k6, k7 = jax.random.split(key, 8)

    bs = 1
    img_res = 16
    num_pixels = img_res * img_res          # 256
    n_grad = 64

    vgg_params = init_vgg_params(k_vgg)

    rgb_values = jax.random.uniform(k1, (bs * num_pixels, 3), jnp.float32)
    rgb_gt = jax.random.uniform(k2, (bs, num_pixels, 3), jnp.float32)
    sdf_output = jax.random.normal(k3, (bs * num_pixels, 1), jnp.float32)
    grad_theta = jax.random.normal(k4, (n_grad, 3), jnp.float32)
    network_object_mask = jax.random.bernoulli(k5, 0.6, (bs * num_pixels,))
    object_mask = jax.random.bernoulli(k6, 0.6, (bs * num_pixels,))
    style_img = jax.random.uniform(k7, (1, img_res, img_res, 3), jnp.float32)

    model_outputs = {
        "rgb_values": rgb_values,
        "sdf_output": sdf_output,
        "grad_theta": grad_theta,
        "network_object_mask": network_object_mask,
        "object_mask": object_mask,
    }
    ground_truth = {
        "rgb": rgb_gt,
        "style_img": style_img,
        "img_res": img_res,
    }

    loss_module = IDRLossPallas(
        rgb_weight=1.0, eikonal_weight=0.1, mask_weight=100.0, alpha=50.0,
        perceptual_weight=1.0, content_weight=1.0, style_weight=1.0,
        vgg_params=vgg_params)

    out = loss_module(model_outputs, ground_truth)
    out = jax.tree_util.tree_map(jax.block_until_ready, out)
    assert all(bool(jnp.isfinite(v)) for v in out.values())
    print("KERNEL_OK")
</pallas_src>

<mosaic_0001>
module attributes {stable_mosaic.version = 11 : i64} {
  func.func @_pixel_losses_kernel(%arg0: memref<256x3xf32, #tpu.memory_space<vmem>>, %arg1: memref<256x3xf32, #tpu.memory_space<vmem>>, %arg2: memref<256x1xf32, #tpu.memory_space<vmem>>, %arg3: memref<256x1xf32, #tpu.memory_space<vmem>>, %arg4: memref<256x1xf32, #tpu.memory_space<vmem>>, %arg5: memref<256x1xf32, #tpu.memory_space<vmem>>, %arg6: memref<1x1xf32, #tpu.memory_space<vmem>>, %arg7: memref<1x1xf32, #tpu.memory_space<vmem>>) attributes {dimension_semantics = [], scalar_prefetch = 0 : i64, scratch_operands = 0 : i64, tpu.core_type = #tpu.core_type<tc>} {
    %c0 = arith.constant 0 : index
    %c0_0 = arith.constant 0 : index
    %0 = vector.load %arg0[%c0, %c0_0] : memref<256x3xf32, #tpu.memory_space<vmem>>, vector<256x3xf32>
    %c0_1 = arith.constant 0 : index
    %c0_2 = arith.constant 0 : index
    %1 = vector.load %arg1[%c0_1, %c0_2] : memref<256x3xf32, #tpu.memory_space<vmem>>, vector<256x3xf32>
    %2 = arith.subf %0, %1 : vector<256x3xf32>
    %3 = math.absf %2 : vector<256x3xf32>
    %c0_3 = arith.constant 0 : index
    %c0_4 = arith.constant 0 : index
    %4 = vector.load %arg2[%c0_3, %c0_4] : memref<256x1xf32, #tpu.memory_space<vmem>>, vector<256x1xf32>
    %5 = vector.broadcast %4 : vector<256x1xf32> to vector<256x3xf32>
    %6 = arith.mulf %3, %5 : vector<256x3xf32>
    %7 = vector.shape_cast %6 : vector<256x3xf32> to vector<1x256x3xf32>
    %cst = arith.constant dense<0.000000e+00> : vector<1xf32>
    %8 = vector.multi_reduction <add>, %7, %cst [1, 2] : vector<1x256x3xf32> to vector<1xf32>
    %9 = vector.shape_cast %8 : vector<1xf32> to vector<1x1x1xf32>
    %10 = vector.extract %9[0, 0, 0] : f32 from vector<1x1x1xf32>
    %11 = vector.broadcast %10 : f32 to vector<1x1xf32>
    %c0_5 = arith.constant 0 : index
    %c0_6 = arith.constant 0 : index
    %12 = vector.load %arg6[%c0_5, %c0_6] : memref<1x1xf32, #tpu.memory_space<vmem>>, vector<1x1xf32>
    tpu.vector_store %arg6[%c0_5, %c0_6], %11 {strides = array<i32>} : memref<1x1xf32, #tpu.memory_space<vmem>>, vector<1x1xf32>,
    %c0_7 = arith.constant 0 : index
    %c0_8 = arith.constant 0 : index
    %13 = vector.load %arg3[%c0_7, %c0_8] : memref<256x1xf32, #tpu.memory_space<vmem>>, vector<256x1xf32>
    %cst_9 = arith.constant -5.000000e+01 : f32
    %14 = vector.broadcast %cst_9 : f32 to vector<256x1xf32>
    %15 = arith.mulf %14, %13 : vector<256x1xf32>
    %c0_10 = arith.constant 0 : index
    %c0_11 = arith.constant 0 : index
    %16 = vector.load %arg4[%c0_10, %c0_11] : memref<256x1xf32, #tpu.memory_space<vmem>>, vector<256x1xf32>
    %cst_12 = arith.constant 0.000000e+00 : f32
    %17 = vector.broadcast %cst_12 : f32 to vector<256x1xf32>
    %18 = arith.maximumf %15, %17 : vector<256x1xf32>
    %19 = arith.mulf %15, %16 : vector<256x1xf32>
    %20 = arith.subf %18, %19 : vector<256x1xf32>
    %21 = math.absf %15 : vector<256x1xf32>
    %cst_13 = arith.constant 0.000000e+00 : f32
    %22 = vector.broadcast %cst_13 : f32 to vector<256x1xf32>
    %23 = arith.subf %22, %21 : vector<256x1xf32>
    %24 = math.exp %23 : vector<256x1xf32>
    %cst_14 = arith.constant 1.000000e+00 : f32
    %25 = vector.broadcast %cst_14 : f32 to vector<256x1xf32>
    %26 = arith.addf %25, %24 : vector<256x1xf32>
    %27 = math.log %26 : vector<256x1xf32>
    %28 = arith.addf %20, %27 : vector<256x1xf32>
    %c0_15 = arith.constant 0 : index
    %c0_16 = arith.constant 0 : index
    %29 = vector.load %arg5[%c0_15, %c0_16] : memref<256x1xf32, #tpu.memory_space<vmem>>, vector<256x1xf32>
    %30 = arith.mulf %28, %29 : vector<256x1xf32>
    %31 = vector.shape_cast %30 : vector<256x1xf32> to vector<1x256x1xf32>
    %cst_17 = arith.constant dense<0.000000e+00> : vector<1xf32>
    %32 = vector.multi_reduction <add>, %31, %cst_17 [1, 2] : vector<1x256x1xf32> to vector<1xf32>
    %33 = vector.shape_cast %32 : vector<1xf32> to vector<1x1x1xf32>
    %34 = vector.extract %33[0, 0, 0] : f32 from vector<1x1x1xf32>
    %35 = vector.broadcast %34 : f32 to vector<1x1xf32>
    %c0_18 = arith.constant 0 : index
    %c0_19 = arith.constant 0 : index
    %36 = vector.load %arg7[%c0_18, %c0_19] : memref<1x1xf32, #tpu.memory_space<vmem>>, vector<1x1xf32>
    tpu.vector_store %arg7[%c0_18, %c0_19], %35 {strides = array<i32>} : memref<1x1xf32, #tpu.memory_space<vmem>>, vector<1x1xf32>,
    return
  }
}

</mosaic_0001>

<llo_original>
// kernel: tpu_custom_call.1
$region0: #{tpu_custom_call.1}
  #allocation0 [shape = 'u32[]', space=smem, size = 0x4, offset = 0x4, fixed_abs, tag = 'smem constant byte address 0x4 - core index']
  #allocation1 [shape = 'u32[144,128]{1,0:T(1,128)}', space=vmem, size = 0x12000, scoped, tag = 'internal scratch']
  %s0 = inlined_call_operand.vmem [shape: f32[256,3], index: 0, kind: input, shape index: {}]
  %s1 = inlined_call_operand.vmem [shape: f32[256,3], index: 1, kind: input, shape index: {}]
  %s2 = inlined_call_operand.vmem [shape: f32[256,1], index: 2, kind: input, shape index: {}]
  %s3 = inlined_call_operand.vmem [shape: f32[256,1], index: 3, kind: input, shape index: {}]
  %s4 = inlined_call_operand.vmem [shape: f32[256,1], index: 4, kind: input, shape index: {}]
  %s5 = inlined_call_operand.vmem [shape: f32[256,1], index: 5, kind: input, shape index: {}]
  %s6 = inlined_call_operand.hbm [shape: f32[1,1], index: 6, kind: output, shape index: {0}]
  %s7 = inlined_call_operand.hbm [shape: f32[1,1], index: 7, kind: output, shape index: {1}]
  %8 = xla_tuple %s6, %s7
  %s9 = sld [smem:[#allocation0]]
  $region42: #{tpu_custom_call.1} parent=0
    _
  %s11 = ssub.s32 1, %s9
  %s12 = scalar_select 0, %s11, %s9
  $region1: #{tpu_custom_call.1} parent=0
    #allocation2 [shape = 'u8[512]{0}', space=vmem, size = 0x400, scoped, tag = 'output window, operand 0, single buffered']
    #allocation3 [shape = 's32[1]{0}', space=sflag, size = 0x4, scoped, tag = 'scoped memory for tpu_custom_call.1']
    #allocation4 [shape = 'u8[512]{0}', space=vmem, size = 0x400, scoped, tag = 'output window, operand 1, single buffered']
    #allocation5 [shape = 's32[1]{0}', space=sflag, size = 0x4, scoped, tag = 'scoped memory for tpu_custom_call.1']
    %13 = vsyncpa [#allocation3], 0
    %14 = vsyncpa [#allocation5], 0
    // Predicated region
    $region2: #{tpu_custom_call.1} parent=1 // pred_check
      _
    $region3: #{tpu_custom_call.1} parent=1 // pred_check_branch
      %16 = sbr.rel (0) target = $region5
    $region4: #{tpu_custom_call.1} parent=1 // pred_region
      _
    $region5: #{tpu_custom_call.1} parent=1 // pred_fallthru
      _
    // Predicated region
    $region6: #{tpu_custom_call.1} parent=1 // pred_check
      _
    $region7: #{tpu_custom_call.1} parent=1 // pred_check_branch
      %18 = sbr.rel (0) target = $region9
    $region8: #{tpu_custom_call.1} parent=1 // pred_region
      _
    $region9: #{tpu_custom_call.1} parent=1 // pred_fallthru
      _
    // Predicated region
    $region10: #{tpu_custom_call.1} parent=1 // pred_check
      _
    $region11: #{tpu_custom_call.1} parent=1 // pred_check_branch
      %20 = sbr.rel (0) target = $region13
    $region12: #{tpu_custom_call.1} parent=1 // pred_region
      _
    $region13: #{tpu_custom_call.1} parent=1 // pred_fallthru
      _
    // Predicated region
    $region14: #{tpu_custom_call.1} parent=1 // pred_check
      _
    $region15: #{tpu_custom_call.1} parent=1 // pred_check_branch
      %22 = sbr.rel (0) target = $region17
    $region16: #{tpu_custom_call.1} parent=1 // pred_region
      _
    $region17: #{tpu_custom_call.1} parent=1 // pred_fallthru
      _
    // Predicated region
    $region18: #{tpu_custom_call.1} parent=1 // pred_check
      _
    $region19: #{tpu_custom_call.1} parent=1 // pred_check_branch
      %24 = sbr.rel (0) target = $region21
    $region20: #{tpu_custom_call.1} parent=1 // pred_region
      _
    $region21: #{tpu_custom_call.1} parent=1 // pred_fallthru
      _
    // Predicated region
    $region22: #{tpu_custom_call.1} parent=1 // pred_check
      _
    $region23: #{tpu_custom_call.1} parent=1 // pred_check_branch
      %26 = sbr.rel (0) target = $region25
    $region24: #{tpu_custom_call.1} parent=1 // pred_region
      _
    $region25: #{tpu_custom_call.1} parent=1 // pred_fallthru
      _
    %v27 = vld [vmem:[%s0] sm:$0xff]
    %v28 = vld [vmem:[%s0 + $0x8] sm:$0xff]
    %v29 = vld [vmem:[%s0 + $0x10] sm:$0xff]
    %v30 = vld [vmem:[%s0 + $0x18] sm:$0xff]
    %v31 = vld [vmem:[%s0 + $0x20] sm:$0xff]
    %v32 = vld [vmem:[%s0 + $0x28] sm:$0xff]
    %v33 = vld [vmem:[%s0 + $0x30] sm:$0xff]
    %v34 = vld [vmem:[%s0 + $0x38] sm:$0xff]
    %v35 = vld [vmem:[%s0 + $0x40] sm:$0xff]
    %v36 = vld [vmem:[%s0 + $0x48] sm:$0xff]
    %v37 = vld [vmem:[%s0 + $0x50] sm:$0xff]
    %v38 = vld [vmem:[%s0 + $0x58] sm:$0xff]
    %v39 = vld [vmem:[%s0 + $0x60] sm:$0xff]
    %v40 = vld [vmem:[%s0 + $0x68] sm:$0xff]
    %v41 = vld [vmem:[%s0 + $0x70] sm:$0xff]
    %v42 = vld [vmem:[%s0 + $0x78] sm:$0xff]
    %v43 = vld [vmem:[%s0 + $0x80] sm:$0xff]
    %v44 = vld [vmem:[%s0 + $0x88] sm:$0xff]
    %v45 = vld [vmem:[%s0 + $0x90] sm:$0xff]
    %v46 = vld [vmem:[%s0 + $0x98] sm:$0xff]
    %v47 = vld [vmem:[%s0 + $0xa0] sm:$0xff]
    %v48 = vld [vmem:[%s0 + $0xa8] sm:$0xff]
    %v49 = vld [vmem:[%s0 + $0xb0] sm:$0xff]
    %v50 = vld [vmem:[%s0 + $0xb8] sm:$0xff]
    %v51 = vld [vmem:[%s0 + $0xc0] sm:$0xff]
    %v52 = vld [vmem:[%s0 + $0xc8] sm:$0xff]
    %v53 = vld [vmem:[%s0 + $0xd0] sm:$0xff]
    %v54 = vld [vmem:[%s0 + $0xd8] sm:$0xff]
    %v55 = vld [vmem:[%s0 + $0xe0] sm:$0xff]
    %v56 = vld [vmem:[%s0 + $0xe8] sm:$0xff]
    %v57 = vld [vmem:[%s0 + $0xf0] sm:$0xff]
    %v58 = vld [vmem:[%s0 + $0xf8] sm:$0xff]
    %v59 = vld [vmem:[%s1] sm:$0xff]
    %v60 = vld [vmem:[%s1 + $0x8] sm:$0xff]
    %v61 = vld [vmem:[%s1 + $0x10] sm:$0xff]
    %v62 = vld [vmem:[%s1 + $0x18] sm:$0xff]
    %v63 = vld [vmem:[%s1 + $0x20] sm:$0xff]
    %v64 = vld [vmem:[%s1 + $0x28] sm:$0xff]
    %v65 = vld [vmem:[%s1 + $0x30] sm:$0xff]
    %v66 = vld [vmem:[%s1 + $0x38] sm:$0xff]
    %v67 = vld [vmem:[%s1 + $0x40] sm:$0xff]
    %v68 = vld [vmem:[%s1 + $0x48] sm:$0xff]
    %v69 = vld [vmem:[%s1 + $0x50] sm:$0xff]
    %v70 = vld [vmem:[%s1 + $0x58] sm:$0xff]
    %v71 = vld [vmem:[%s1 + $0x60] sm:$0xff]
    %v72 = vld [vmem:[%s1 + $0x68] sm:$0xff]
    %v73 = vld [vmem:[%s1 + $0x70] sm:$0xff]
    %v74 = vld [vmem:[%s1 + $0x78] sm:$0xff]
    %v75 = vld [vmem:[%s1 + $0x80] sm:$0xff]
    %v76 = vld [vmem:[%s1 + $0x88] sm:$0xff]
    %v77 = vld [vmem:[%s1 + $0x90] sm:$0xff]
    %v78 = vld [vmem:[%s1 + $0x98] sm:$0xff]
    %v79 = vld [vmem:[%s1 + $0xa0] sm:$0xff]
    %v80 = vld [vmem:[%s1 + $0xa8] sm:$0xff]
    %v81 = vld [vmem:[%s1 + $0xb0] sm:$0xff]
    %v82 = vld [vmem:[%s1 + $0xb8] sm:$0xff]
    %v83 = vld [vmem:[%s1 + $0xc0] sm:$0xff]
    %v84 = vld [vmem:[%s1 + $0xc8] sm:$0xff]
    %v85 = vld [vmem:[%s1 + $0xd0] sm:$0xff]
    %v86 = vld [vmem:[%s1 + $0xd8] sm:$0xff]
    %v87 = vld [vmem:[%s1 + $0xe0] sm:$0xff]
    %v88 = vld [vmem:[%s1 + $0xe8] sm:$0xff]
    %v89 = vld [vmem:[%s1 + $0xf0] sm:$0xff]
    %v90 = vld [vmem:[%s1 + $0xf8] sm:$0xff]
    %v91 = vsub.f32 %v27, %v59
    %v92 = vsub.f32 %v28, %v60
    %v93 = vsub.f32 %v29, %v61
    %v94 = vsub.f32 %v30, %v62
    %v95 = vsub.f32 %v31, %v63
    %v96 = vsub.f32 %v32, %v64
    %v97 = vsub.f32 %v33, %v65
    %v98 = vsub.f32 %v34, %v66
    %v99 = vsub.f32 %v35, %v67
    %v100 = vsub.f32 %v36, %v68
    %v101 = vsub.f32 %v37, %v69
    %v102 = vsub.f32 %v38, %v70
    %v103 = vsub.f32 %v39, %v71
    %v104 = vsub.f32 %v40, %v72
    %v105 = vsub.f32 %v41, %v73
    %v106 = vsub.f32 %v42, %v74
    %v107 = vsub.f32 %v43, %v75
    %v108 = vsub.f32 %v44, %v76
    %v109 = vsub.f32 %v45, %v77
    %v110 = vsub.f32 %v46, %v78
    %v111 = vsub.f32 %v47, %v79
    %v112 = vsub.f32 %v48, %v80
    %v113 = vsub.f32 %v49, %v81
    %v114 = vsub.f32 %v50, %v82
    %v115 = vsub.f32 %v51, %v83
    %v116 = vsub.f32 %v52, %v84
    %v117 = vsub.f32 %v53, %v85
    %v118 = vsub.f32 %v54, %v86
    %v119 = vsub.f32 %v55, %v87
    %v120 = vsub.f32 %v56, %v88
    %v121 = vsub.f32 %v57, %v89
    %v122 = vsub.f32 %v58, %v90
    %v123 = vand.u32 2147483647, %v91
    %v124 = vand.u32 2147483647, %v92
    %v125 = vand.u32 2147483647, %v93
    %v126 = vand.u32 2147483647, %v94
    %v127 = vand.u32 2147483647, %v95
    %v128 = vand.u32 2147483647, %v96
    %v129 = vand.u32 2147483647, %v97
    %v130 = vand.u32 2147483647, %v98
    %v131 = vand.u32 2147483647, %v99
    %v132 = vand.u32 2147483647, %v100
    %v133 = vand.u32 2147483647, %v101
    %v134 = vand.u32 2147483647, %v102
    %v135 = vand.u32 2147483647, %v103
    %v136 = vand.u32 2147483647, %v104
    %v137 = vand.u32 2147483647, %v105
    %v138 = vand.u32 2147483647, %v106
    %v139 = vand.u32 2147483647, %v107
    %v140 = vand.u32 2147483647, %v108
    %v141 = vand.u32 2147483647, %v109
    %v142 = vand.u32 2147483647, %v110
    %v143 = vand.u32 2147483647, %v111
    %v144 = vand.u32 2147483647, %v112
    %v145 = vand.u32 2147483647, %v113
    %v146 = vand.u32 2147483647, %v114
    %v147 = vand.u32 2147483647, %v115
    %v148 = vand.u32 2147483647, %v116
    %v149 = vand.u32 2147483647, %v117
    %v150 = vand.u32 2147483647, %v118
    %v151 = vand.u32 2147483647, %v119
    %v152 = vand.u32 2147483647, %v120
    %v153 = vand.u32 2147483647, %v121
    %v154 = vand.u32 2147483647, %v122
    %v155 = vld [vmem:[%s2] sm:$0xff]
    %v156 = vld [vmem:[%s2 + $0x8] sm:$0xff]
    %v157 = vld [vmem:[%s2 + $0x10] sm:$0xff]
    %v158 = vld [vmem:[%s2 + $0x18] sm:$0xff]
    %v159 = vld [vmem:[%s2 + $0x20] sm:$0xff]
    %v160 = vld [vmem:[%s2 + $0x28] sm:$0xff]
    %v161 = vld [vmem:[%s2 + $0x30] sm:$0xff]
    %v162 = vld [vmem:[%s2 + $0x38] sm:$0xff]
    %v163 = vld [vmem:[%s2 + $0x40] sm:$0xff]
    %v164 = vld [vmem:[%s2 + $0x48] sm:$0xff]
    %v165 = vld [vmem:[%s2 + $0x50] sm:$0xff]
    %v166 = vld [vmem:[%s2 + $0x58] sm:$0xff]
    %v167 = vld [vmem:[%s2 + $0x60] sm:$0xff]
    %v168 = vld [vmem:[%s2 + $0x68] sm:$0xff]
    %v169 = vld [vmem:[%s2 + $0x70] sm:$0xff]
    %v170 = vld [vmem:[%s2 + $0x78] sm:$0xff]
    %v171 = vld [vmem:[%s2 + $0x80] sm:$0xff]
    %v172 = vld [vmem:[%s2 + $0x88] sm:$0xff]
    %v173 = vld [vmem:[%s2 + $0x90] sm:$0xff]
    %v174 = vld [vmem:[%s2 + $0x98] sm:$0xff]
    %v175 = vld [vmem:[%s2 + $0xa0] sm:$0xff]
    %v176 = vld [vmem:[%s2 + $0xa8] sm:$0xff]
    %v177 = vld [vmem:[%s2 + $0xb0] sm:$0xff]
    %v178 = vld [vmem:[%s2 + $0xb8] sm:$0xff]
    %v179 = vld [vmem:[%s2 + $0xc0] sm:$0xff]
    %v180 = vld [vmem:[%s2 + $0xc8] sm:$0xff]
    %v181 = vld [vmem:[%s2 + $0xd0] sm:$0xff]
    %v182 = vld [vmem:[%s2 + $0xd8] sm:$0xff]
    %v183 = vld [vmem:[%s2 + $0xe0] sm:$0xff]
    %v184 = vld [vmem:[%s2 + $0xe8] sm:$0xff]
    %v185 = vld [vmem:[%s2 + $0xf0] sm:$0xff]
    %v186 = vld [vmem:[%s2 + $0xf8] sm:$0xff]
    %188 = vset.pattern.permute.xlu0 0
    %189 = vperm.xlu0 %188, %v155
    %v190 = vpop.permute.xlu0 %189
    %193 = vset.pattern.permute.xlu0 0
    %194 = vperm.xlu0 %193, %v156
    %v195 = vpop.permute.xlu0 %194
    %198 = vset.pattern.permute.xlu0 0
    %199 = vperm.xlu0 %198, %v157
    %v200 = vpop.permute.xlu0 %199
    %203 = vset.pattern.permute.xlu0 0
    %204 = vperm.xlu0 %203, %v158
    %v205 = vpop.permute.xlu0 %204
    %208 = vset.pattern.permute.xlu0 0
    %209 = vperm.xlu0 %208, %v159
    %v210 = vpop.permute.xlu0 %209
    %213 = vset.pattern.permute.xlu0 0
    %214 = vperm.xlu0 %213, %v160
    %v215 = vpop.permute.xlu0 %214
    %218 = vset.pattern.permute.xlu0 0
    %219 = vperm.xlu0 %218, %v161
    %v220 = vpop.permute.xlu0 %219
    %223 = vset.pattern.permute.xlu0 0
    %224 = vperm.xlu0 %223, %v162
    %v225 = vpop.permute.xlu0 %224
    %228 = vset.pattern.permute.xlu0 0
    %229 = vperm.xlu0 %228, %v163
    %v230 = vpop.permute.xlu0 %229
    %233 = vset.pattern.permute.xlu0 0
    %234 = vperm.xlu0 %233, %v164
    %v235 = vpop.permute.xlu0 %234
    %238 = vset.pattern.permute.xlu0 0
    %239 = vperm.xlu0 %238, %v165
    %v240 = vpop.permute.xlu0 %239
    %243 = vset.pattern.permute.xlu0 0
    %244 = vperm.xlu0 %243, %v166
    %v245 = vpop.permute.xlu0 %244
    %248 = vset.pattern.permute.xlu0 0
    %249 = vperm.xlu0 %248, %v167
    %v250 = vpop.permute.xlu0 %249
    %253 = vset.pattern.permute.xlu0 0
    %254 = vperm.xlu0 %253, %v168
    %v255 = vpop.permute.xlu0 %254
    %258 = vset.pattern.permute.xlu0 0
    %259 = vperm.xlu0 %258, %v169
    %v260 = vpop.permute.xlu0 %259
    %263 = vset.pattern.permute.xlu0 0
    %264 = vperm.xlu0 %263, %v170
    %v265 = vpop.permute.xlu0 %264
    %268 = vset.pattern.permute.xlu0 0
    %269 = vperm.xlu0 %268, %v171
    %v270 = vpop.permute.xlu0 %269
    %273 = vset.pattern.permute.xlu0 0
    %274 = vperm.xlu0 %273, %v172
    %v275 = vpop.permute.xlu0 %274
    %278 = vset.pattern.permute.xlu0 0
    %279 = vperm.xlu0 %278, %v173
    %v280 = vpop.permute.xlu0 %279
    %283 = vset.pattern.permute.xlu0 0
    %284 = vperm.xlu0 %283, %v174
    %v285 = vpop.permute.xlu0 %284
    %288 = vset.pattern.permute.xlu0 0
    %289 = vperm.xlu0 %288, %v175
    %v290 = vpop.permute.xlu0 %289
    %293 = vset.pattern.permute.xlu0 0
    %294 = vperm.xlu0 %293, %v176
    %v295 = vpop.permute.xlu0 %294
    %298 = vset.pattern.permute.xlu0 0
    %299 = vperm.xlu0 %298, %v177
    %v300 = vpop.permute.xlu0 %299
    %303 = vset.pattern.permute.xlu0 0
    %304 = vperm.xlu0 %303, %v178
    %v305 = vpop.permute.xlu0 %304
    %308 = vset.pattern.permute.xlu0 0
    %309 = vperm.xlu0 %308, %v179
    %v310 = vpop.permute.xlu0 %309
    %313 = vset.pattern.permute.xlu0 0
    %314 = vperm.xlu0 %313, %v180
    %v315 = vpop.permute.xlu0 %314
    %318 = vset.pattern.permute.xlu0 0
    %319 = vperm.xlu0 %318, %v181
    %v320 = vpop.permute.xlu0 %319
    %323 = vset.pattern.permute.xlu0 0
    %324 = vperm.xlu0 %323, %v182
    %v325 = vpop.permute.xlu0 %324
    %328 = vset.pattern.permute.xlu0 0
    %329 = vperm.xlu0 %328, %v183
    %v330 = vpop.permute.xlu0 %329
    %333 = vset.pattern.permute.xlu0 0
    %334 = vperm.xlu0 %333, %v184
    %v335 = vpop.permute.xlu0 %334
    %338 = vset.pattern.permute.xlu0 0
    %339 = vperm.xlu0 %338, %v185
    %v340 = vpop.permute.xlu0 %339
    %343 = vset.pattern.permute.xlu0 0
    %344 = vperm.xlu0 %343, %v186
    %v345 = vpop.permute.xlu0 %344
    %v347 = vmul.f32 %v123, %v190
    %v348 = vmul.f32 %v124, %v195
    %v349 = vmul.f32 %v125, %v200
    %v350 = vmul.f32 %v126, %v205
    %v351 = vmul.f32 %v127, %v210
    %v352 = vmul.f32 %v128, %v215
    %v353 = vmul.f32 %v129, %v220
    %v354 = vmul.f32 %v130, %v225
    %v355 = vmul.f32 %v131, %v230
    %v356 = vmul.f32 %v132, %v235
    %v357 = vmul.f32 %v133, %v240
    %v358 = vmul.f32 %v134, %v245
    %v359 = vmul.f32 %v135, %v250
    %v360 = vmul.f32 %v136, %v255
    %v361 = vmul.f32 %v137, %v260
    %v362 = vmul.f32 %v138, %v265
    %v363 = vmul.f32 %v139, %v270
    %v364 = vmul.f32 %v140, %v275
    %v365 = vmul.f32 %v141, %v280
    %v366 = vmul.f32 %v142, %v285
    %v367 = vmul.f32 %v143, %v290
    %v368 = vmul.f32 %v144, %v295
    %v369 = vmul.f32 %v145, %v300
    %v370 = vmul.f32 %v146, %v305
    %v371 = vmul.f32 %v147, %v310
    %v372 = vmul.f32 %v148, %v315
    %v373 = vmul.f32 %v149, %v320
    %v374 = vmul.f32 %v150, %v325
    %v375 = vmul.f32 %v151, %v330
    %v376 = vmul.f32 %v152, %v335
    %v377 = vmul.f32 %v153, %v340
    %v378 = vmul.f32 %v154, %v345
    %vm379 = vcmask 23552
    %v380 = vsel %vm379, %v347, 0.0
    %v381 = vsel %vm379, %v348, 0.0
    %v382 = vadd.f32 %v380, %v381
    %v383 = vsel %vm379, %v349, 0.0
    %v384 = vadd.f32 %v382, %v383
    %v385 = vsel %vm379, %v350, 0.0
    %v386 = vadd.f32 %v384, %v385
    %v387 = vsel %vm379, %v351, 0.0
    %v388 = vadd.f32 %v386, %v387
    %v389 = vsel %vm379, %v352, 0.0
    %v390 = vadd.f32 %v388, %v389
    %v391 = vsel %vm379, %v353, 0.0
    %v392 = vadd.f32 %v390, %v391
    %v393 = vsel %vm379, %v354, 0.0
    %v394 = vadd.f32 %v392, %v393
    %v395 = vsel %vm379, %v355, 0.0
    %v396 = vadd.f32 %v394, %v395
    %v397 = vsel %vm379, %v356, 0.0
    %v398 = vadd.f32 %v396, %v397
    %v399 = vsel %vm379, %v357, 0.0
    %v400 = vadd.f32 %v398, %v399
    %v401 = vsel %vm379, %v358, 0.0
    %v402 = vadd.f32 %v400, %v401
    %v403 = vsel %vm379, %v359, 0.0
    %v404 = vadd.f32 %v402, %v403
    %v405 = vsel %vm379, %v360, 0.0
    %v406 = vadd.f32 %v404, %v405
    %v407 = vsel %vm379, %v361, 0.0
    %v408 = vadd.f32 %v406, %v407
    %v409 = vsel %vm379, %v362, 0.0
    %v410 = vadd.f32 %v408, %v409
    %v411 = vsel %vm379, %v363, 0.0
    %v412 = vadd.f32 %v410, %v411
    %v413 = vsel %vm379, %v364, 0.0
    %v414 = vadd.f32 %v412, %v413
    %v415 = vsel %vm379, %v365, 0.0
    %v416 = vadd.f32 %v414, %v415
    %v417 = vsel %vm379, %v366, 0.0
    %v418 = vadd.f32 %v416, %v417
    %v419 = vsel %vm379, %v367, 0.0
    %v420 = vadd.f32 %v418, %v419
    %v421 = vsel %vm379, %v368, 0.0
    %v422 = vadd.f32 %v420, %v421
    %v423 = vsel %vm379, %v369, 0.0
    %v424 = vadd.f32 %v422, %v423
    %v425 = vsel %vm379, %v370, 0.0
    %v426 = vadd.f32 %v424, %v425
    %v427 = vsel %vm379, %v371, 0.0
    %v428 = vadd.f32 %v426, %v427
    %v429 = vsel %vm379, %v372, 0.0
    %v430 = vadd.f32 %v428, %v429
    %v431 = vsel %vm379, %v373, 0.0
    %v432 = vadd.f32 %v430, %v431
    %v433 = vsel %vm379, %v374, 0.0
    %v434 = vadd.f32 %v432, %v433
    %v435 = vsel %vm379, %v375, 0.0
    %v436 = vadd.f32 %v434, %v435
    %v437 = vsel %vm379, %v376, 0.0
    %v438 = vadd.f32 %v436, %v437
    %v439 = vsel %vm379, %v377, 0.0
    %v440 = vadd.f32 %v438, %v439
    %v441 = vsel %vm379, %v378, 0.0
    %v442 = vadd.f32 %v440, %v441
    %443 = vadd.xlane.f32.xlu0 %v442
    %v444 = vpop.xlane.xlu0 %443
    %v445 = vrot.slane %v444, 4
    %v446 = vadd.f32 %v444, %v445
    %v447 = vrot.slane %v446, 2
    %v448 = vadd.f32 %v446, %v447
    %v449 = vrot.slane %v448, 1
    %v450 = vadd.f32 %v448, %v449
    %s451 = vtos %v450
    %v452 = vstv %s451
    %vm453 = vcmask 0
    %454 = vst.msk [vmem:[#allocation2] sm:$0x1] %vm453, %v452
    %v455 = vld [vmem:[%s3] sm:$0xff]
    %v456 = vld [vmem:[%s3 + $0x8] sm:$0xff]
    %v457 = vld [vmem:[%s3 + $0x10] sm:$0xff]
    %v458 = vld [vmem:[%s3 + $0x18] sm:$0xff]
    %v459 = vld [vmem:[%s3 + $0x20] sm:$0xff]
    %v460 = vld [vmem:[%s3 + $0x28] sm:$0xff]
    %v461 = vld [vmem:[%s3 + $0x30] sm:$0xff]
    %v462 = vld [vmem:[%s3 + $0x38] sm:$0xff]
    %v463 = vld [vmem:[%s3 + $0x40] sm:$0xff]
    %v464 = vld [vmem:[%s3 + $0x48] sm:$0xff]
    %v465 = vld [vmem:[%s3 + $0x50] sm:$0xff]
    %v466 = vld [vmem:[%s3 + $0x58] sm:$0xff]
    %v467 = vld [vmem:[%s3 + $0x60] sm:$0xff]
    %v468 = vld [vmem:[%s3 + $0x68] sm:$0xff]
    %v469 = vld [vmem:[%s3 + $0x70] sm:$0xff]
    %v470 = vld [vmem:[%s3 + $0x78] sm:$0xff]
    %v471 = vld [vmem:[%s3 + $0x80] sm:$0xff]
    %v472 = vld [vmem:[%s3 + $0x88] sm:$0xff]
    %v473 = vld [vmem:[%s3 + $0x90] sm:$0xff]
    %v474 = vld [vmem:[%s3 + $0x98] sm:$0xff]
    %v475 = vld [vmem:[%s3 + $0xa0] sm:$0xff]
    %v476 = vld [vmem:[%s3 + $0xa8] sm:$0xff]
    %v477 = vld [vmem:[%s3 + $0xb0] sm:$0xff]
    %v478 = vld [vmem:[%s3 + $0xb8] sm:$0xff]
    %v479 = vld [vmem:[%s3 + $0xc0] sm:$0xff]
    %v480 = vld [vmem:[%s3 + $0xc8] sm:$0xff]
    %v481 = vld [vmem:[%s3 + $0xd0] sm:$0xff]
    %v482 = vld [vmem:[%s3 + $0xd8] sm:$0xff]
    %v483 = vld [vmem:[%s3 + $0xe0] sm:$0xff]
    %v484 = vld [vmem:[%s3 + $0xe8] sm:$0xff]
    %v485 = vld [vmem:[%s3 + $0xf0] sm:$0xff]
    %v486 = vld [vmem:[%s3 + $0xf8] sm:$0xff]
    %v487 = vmul.f32 %v455, -50.0
    %v488 = vmul.f32 %v456, -50.0
    %v489 = vmul.f32 %v457, -50.0
    %v490 = vmul.f32 %v458, -50.0
    %v491 = vmul.f32 %v459, -50.0
    %v492 = vmul.f32 %v460, -50.0
    %v493 = vmul.f32 %v461, -50.0
    %v494 = vmul.f32 %v462, -50.0
    %v495 = vmul.f32 %v463, -50.0
    %v496 = vmul.f32 %v464, -50.0
    %v497 = vmul.f32 %v465, -50.0
    %v498 = vmul.f32 %v466, -50.0
    %v499 = vmul.f32 %v467, -50.0
    %v500 = vmul.f32 %v468, -50.0
    %v501 = vmul.f32 %v469, -50.0
    %v502 = vmul.f32 %v470, -50.0
    %v503 = vmul.f32 %v471, -50.0
    %v504 = vmul.f32 %v472, -50.0
    %v505 = vmul.f32 %v473, -50.0
    %v506 = vmul.f32 %v474, -50.0
    %v507 = vmul.f32 %v475, -50.0
    %v508 = vmul.f32 %v476, -50.0
    %v509 = vmul.f32 %v477, -50.0
    %v510 = vmul.f32 %v478, -50.0
    %v511 = vmul.f32 %v479, -50.0
    %v512 = vmul.f32 %v480, -50.0
    %v513 = vmul.f32 %v481, -50.0
    %v514 = vmul.f32 %v482, -50.0
    %v515 = vmul.f32 %v483, -50.0
    %v516 = vmul.f32 %v484, -50.0
    %v517 = vmul.f32 %v485, -50.0
    %v518 = vmul.f32 %v486, -50.0
    %v519 = vld [vmem:[%s4] sm:$0xff]
    %v520 = vld [vmem:[%s4 + $0x8] sm:$0xff]
    %v521 = vld [vmem:[%s4 + $0x10] sm:$0xff]
    %v522 = vld [vmem:[%s4 + $0x18] sm:$0xff]
    %v523 = vld [vmem:[%s4 + $0x20] sm:$0xff]
    %v524 = vld [vmem:[%s4 + $0x28] sm:$0xff]
    %v525 = vld [vmem:[%s4 + $0x30] sm:$0xff]
    %v526 = vld [vmem:[%s4 + $0x38] sm:$0xff]
    %v527 = vld [vmem:[%s4 + $0x40] sm:$0xff]
    %v528 = vld [vmem:[%s4 + $0x48] sm:$0xff]
    %v529 = vld [vmem:[%s4 + $0x50] sm:$0xff]
    %v530 = vld [vmem:[%s4 + $0x58] sm:$0xff]
    %v531 = vld [vmem:[%s4 + $0x60] sm:$0xff]
    %v532 = vld [vmem:[%s4 + $0x68] sm:$0xff]
    %v533 = vld [vmem:[%s4 + $0x70] sm:$0xff]
    %v534 = vld [vmem:[%s4 + $0x78] sm:$0xff]
    %v535 = vld [vmem:[%s4 + $0x80] sm:$0xff]
    %v536 = vld [vmem:[%s4 + $0x88] sm:$0xff]
    %v537 = vld [vmem:[%s4 + $0x90] sm:$0xff]
    %v538 = vld [vmem:[%s4 + $0x98] sm:$0xff]
    %v539 = vld [vmem:[%s4 + $0xa0] sm:$0xff]
    %v540 = vld [vmem:[%s4 + $0xa8] sm:$0xff]
    %v541 = vld [vmem:[%s4 + $0xb0] sm:$0xff]
    %v542 = vld [vmem:[%s4 + $0xb8] sm:$0xff]
    %v543 = vld [vmem:[%s4 + $0xc0] sm:$0xff]
    %v544 = vld [vmem:[%s4 + $0xc8] sm:$0xff]
    %v545 = vld [vmem:[%s4 + $0xd0] sm:$0xff]
    %v546 = vld [vmem:[%s4 + $0xd8] sm:$0xff]
    %v547 = vld [vmem:[%s4 + $0xe0] sm:$0xff]
    %v548 = vld [vmem:[%s4 + $0xe8] sm:$0xff]
    %v549 = vld [vmem:[%s4 + $0xf0] sm:$0xff]
    %v550 = vld [vmem:[%s4 + $0xf8] sm:$0xff]
    %v551 = vmax.f32 %v487, 0.0
    %v552 = vmax.f32 %v488, 0.0
    %v553 = vmax.f32 %v489, 0.0
    %v554 = vmax.f32 %v490, 0.0
    %v555 = vmax.f32 %v491, 0.0
    %v556 = vmax.f32 %v492, 0.0
    %v557 = vmax.f32 %v493, 0.0
    %v558 = vmax.f32 %v494, 0.0
    %v559 = vmax.f32 %v495, 0.0
    %v560 = vmax.f32 %v496, 0.0
    %v561 = vmax.f32 %v497, 0.0
    %v562 = vmax.f32 %v498, 0.0
    %v563 = vmax.f32 %v499, 0.0
    %v564 = vmax.f32 %v500, 0.0
    %v565 = vmax.f32 %v501, 0.0
    %v566 = vmax.f32 %v502, 0.0
    %v567 = vmax.f32 %v503, 0.0
    %v568 = vmax.f32 %v504, 0.0
    %v569 = vmax.f32 %v505, 0.0
    %v570 = vmax.f32 %v506, 0.0
    %v571 = vmax.f32 %v507, 0.0
    %v572 = vmax.f32 %v508, 0.0
    %v573 = vmax.f32 %v509, 0.0
    %v574 = vmax.f32 %v510, 0.0
    %v575 = vmax.f32 %v511, 0.0
    %v576 = vmax.f32 %v512, 0.0
    %v577 = vmax.f32 %v513, 0.0
    %v578 = vmax.f32 %v514, 0.0
    %v579 = vmax.f32 %v515, 0.0
    %v580 = vmax.f32 %v516, 0.0
    %v581 = vmax.f32 %v517, 0.0
    %v582 = vmax.f32 %v518, 0.0
    %v583 = vmul.f32 %v487, %v519
    %v584 = vmul.f32 %v488, %v520
    %v585 = vmul.f32 %v489, %v521
    %v586 = vmul.f32 %v490, %v522
    %v587 = vmul.f32 %v491, %v523
    %v588 = vmul.f32 %v492, %v524
    %v589 = vmul.f32 %v493, %v525
    %v590 = vmul.f32 %v494, %v526
    %v591 = vmul.f32 %v495, %v527
    %v592 = vmul.f32 %v496, %v528
    %v593 = vmul.f32 %v497, %v529
    %v594 = vmul.f32 %v498, %v530
    %v595 = vmul.f32 %v499, %v531
    %v596 = vmul.f32 %v500, %v532
    %v597 = vmul.f32 %v501, %v533
    %v598 = vmul.f32 %v502, %v534
    %v599 = vmul.f32 %v503, %v535
    %v600 = vmul.f32 %v504, %v536
    %v601 = vmul.f32 %v505, %v537
    %v602 = vmul.f32 %v506, %v538
    %v603 = vmul.f32 %v507, %v539
    %v604 = vmul.f32 %v508, %v540
    %v605 = vmul.f32 %v509, %v541
    %v606 = vmul.f32 %v510, %v542
    %v607 = vmul.f32 %v511, %v543
    %v608 = vmul.f32 %v512, %v544
    %v609 = vmul.f32 %v513, %v545
    %v610 = vmul.f32 %v514, %v546
    %v611 = vmul.f32 %v515, %v547
    %v612 = vmul.f32 %v516, %v548
    %v613 = vmul.f32 %v517, %v549
    %v614 = vmul.f32 %v518, %v550
    %v615 = vsub.f32 %v551, %v583
    %v616 = vsub.f32 %v552, %v584
    %v617 = vsub.f32 %v553, %v585
    %v618 = vsub.f32 %v554, %v586
    %v619 = vsub.f32 %v555, %v587
    %v620 = vsub.f32 %v556, %v588
    %v621 = vsub.f32 %v557, %v589
    %v622 = vsub.f32 %v558, %v590
    %v623 = vsub.f32 %v559, %v591
    %v624 = vsub.f32 %v560, %v592
    %v625 = vsub.f32 %v561, %v593
    %v626 = vsub.f32 %v562, %v594
    %v627 = vsub.f32 %v563, %v595
    %v628 = vsub.f32 %v564, %v596
    %v629 = vsub.f32 %v565, %v597
    %v630 = vsub.f32 %v566, %v598
    %v631 = vsub.f32 %v567, %v599
    %v632 = vsub.f32 %v568, %v600
    %v633 = vsub.f32 %v569, %v601
    %v634 = vsub.f32 %v570, %v602
    %v635 = vsub.f32 %v571, %v603
    %v636 = vsub.f32 %v572, %v604
    %v637 = vsub.f32 %v573, %v605
    %v638 = vsub.f32 %v574, %v606
    %v639 = vsub.f32 %v575, %v607
    %v640 = vsub.f32 %v576, %v608
    %v641 = vsub.f32 %v577, %v609
    %v642 = vsub.f32 %v578, %v610
    %v643 = vsub.f32 %v579, %v611
    %v644 = vsub.f32 %v580, %v612
    %v645 = vsub.f32 %v581, %v613
    %v646 = vsub.f32 %v582, %v614
    %v647 = vand.u32 2147483647, %v487
    %v648 = vand.u32 2147483647, %v488
    %v649 = vand.u32 2147483647, %v489
    %v650 = vand.u32 2147483647, %v490
    %v651 = vand.u32 2147483647, %v491
    %v652 = vand.u32 2147483647, %v492
    %v653 = vand.u32 2147483647, %v493
    %v654 = vand.u32 2147483647, %v494
    %v655 = vand.u32 2147483647, %v495
    %v656 = vand.u32 2147483647, %v496
    %v657 = vand.u32 2147483647, %v497
    %v658 = vand.u32 2147483647, %v498
    %v659 = vand.u32 2147483647, %v499
    %v660 = vand.u32 2147483647, %v500
    %v661 = vand.u32 2147483647, %v501
    %v662 = vand.u32 2147483647, %v502
    %v663 = vand.u32 2147483647, %v503
    %v664 = vand.u32 2147483647, %v504
    %v665 = vand.u32 2147483647, %v505
    %v666 = vand.u32 2147483647, %v506
    %v667 = vand.u32 2147483647, %v507
    %v668 = vand.u32 2147483647, %v508
    %v669 = vand.u32 2147483647, %v509
    %v670 = vand.u32 2147483647, %v510
    %v671 = vand.u32 2147483647, %v511
    %v672 = vand.u32 2147483647, %v512
    %v673 = vand.u32 2147483647, %v513
    %v674 = vand.u32 2147483647, %v514
    %v675 = vand.u32 2147483647, %v515
    %v676 = vand.u32 2147483647, %v516
    %v677 = vand.u32 2147483647, %v517
    %v678 = vand.u32 2147483647, %v518
    %v679 = vsub.f32 0.0, %v647
    %v680 = vsub.f32 0.0, %v648
    %v681 = vsub.f32 0.0, %v649
    %v682 = vsub.f32 0.0, %v650
    %v683 = vsub.f32 0.0, %v651
    %v684 = vsub.f32 0.0, %v652
    %v685 = vsub.f32 0.0, %v653
    %v686 = vsub.f32 0.0, %v654
    %v687 = vsub.f32 0.0, %v655
    %v688 = vsub.f32 0.0, %v656
    %v689 = vsub.f32 0.0, %v657
    %v690 = vsub.f32 0.0, %v658
    %v691 = vsub.f32 0.0, %v659
    %v692 = vsub.f32 0.0, %v660
    %v693 = vsub.f32 0.0, %v661
    %v694 = vsub.f32 0.0, %v662
    %v695 = vsub.f32 0.0, %v663
    %v696 = vsub.f32 0.0, %v664
    %v697 = vsub.f32 0.0, %v665
    %v698 = vsub.f32 0.0, %v666
    %v699 = vsub.f32 0.0, %v667
    %v700 = vsub.f32 0.0, %v668
    %v701 = vsub.f32 0.0, %v669
    %v702 = vsub.f32 0.0, %v670
    %v703 = vsub.f32 0.0, %v671
    %v704 = vsub.f32 0.0, %v672
    %v705 = vsub.f32 0.0, %v673
    %v706 = vsub.f32 0.0, %v674
    %v707 = vsub.f32 0.0, %v675
    %v708 = vsub.f32 0.0, %v676
    %v709 = vsub.f32 0.0, %v677
    %v710 = vsub.f32 0.0, %v678
    %v711 = vmul.f32 %v679, 1.442695
    %v712 = vpow.pop %v711
    %v713 = vmul.f32 %v680, 1.442695
    %v714 = vpow.pop %v713
    %v715 = vmul.f32 %v681, 1.442695
    %v716 = vpow.pop %v715
    %v717 = vmul.f32 %v682, 1.442695
    %v718 = vpow.pop %v717
    %v719 = vmul.f32 %v683, 1.442695
    %v720 = vpow.pop %v719
    %v721 = vmul.f32 %v684, 1.442695
    %v722 = vpow.pop %v721
    %v723 = vmul.f32 %v685, 1.442695
    %v724 = vpow.pop %v723
    %v725 = vmul.f32 %v686, 1.442695
    %v726 = vpow.pop %v725
    %v727 = vmul.f32 %v687, 1.442695
    %v728 = vpow.pop %v727
    %v729 = vmul.f32 %v688, 1.442695
    %v730 = vpow.pop %v729
    %v731 = vmul.f32 %v689, 1.442695
    %v732 = vpow.pop %v731
    %v733 = vmul.f32 %v690, 1.442695
    %v734 = vpow.pop %v733
    %v735 = vmul.f32 %v691, 1.442695
    %v736 = vpow.pop %v735
    %v737 = vmul.f32 %v692, 1.442695
    %v738 = vpow.pop %v737
    %v739 = vmul.f32 %v693, 1.442695
    %v740 = vpow.pop %v739
    %v741 = vmul.f32 %v694, 1.442695
    %v742 = vpow.pop %v741
    %v743 = vmul.f32 %v695, 1.442695
    %v744 = vpow.pop %v743
    %v745 = vmul.f32 %v696, 1.442695
    %v746 = vpow.pop %v745
    %v747 = vmul.f32 %v697, 1.442695
    %v748 = vpow.pop %v747
    %v749 = vmul.f32 %v698, 1.442695
    %v750 = vpow.pop %v749
    %v751 = vmul.f32 %v699, 1.442695
    %v752 = vpow.pop %v751
    %v753 = vmul.f32 %v700, 1.442695
    %v754 = vpow.pop %v753
    %v755 = vmul.f32 %v701, 1.442695
    %v756 = vpow.pop %v755
    %v757 = vmul.f32 %v702, 1.442695
    %v758 = vpow.pop %v757
    %v759 = vmul.f32 %v703, 1.442695
    %v760 = vpow.pop %v759
    %v761 = vmul.f32 %v704, 1.442695
    %v762 = vpow.pop %v761
    %v763 = vmul.f32 %v705, 1.442695
    %v764 = vpow.pop %v763
    %v765 = vmul.f32 %v706, 1.442695
    %v766 = vpow.pop %v765
    %v767 = vmul.f32 %v707, 1.442695
    %v768 = vpow.pop %v767
    %v769 = vmul.f32 %v708, 1.442695
    %v770 = vpow.pop %v769
    %v771 = vmul.f32 %v709, 1.442695
    %v772 = vpow.pop %v771
    %v773 = vmul.f32 %v710, 1.442695
    %v774 = vpow.pop %v773
    %v775 = vadd.f32 %v712, 1.0
    %v776 = vadd.f32 %v714, 1.0
    %v777 = vadd.f32 %v716, 1.0
    %v778 = vadd.f32 %v718, 1.0
    %v779 = vadd.f32 %v720, 1.0
    %v780 = vadd.f32 %v722, 1.0
    %v781 = vadd.f32 %v724, 1.0
    %v782 = vadd.f32 %v726, 1.0
    %v783 = vadd.f32 %v728, 1.0
    %v784 = vadd.f32 %v730, 1.0
    %v785 = vadd.f32 %v732, 1.0
    %v786 = vadd.f32 %v734, 1.0
    %v787 = vadd.f32 %v736, 1.0
    %v788 = vadd.f32 %v738, 1.0
    %v789 = vadd.f32 %v740, 1.0
    %v790 = vadd.f32 %v742, 1.0
    %v791 = vadd.f32 %v744, 1.0
    %v792 = vadd.f32 %v746, 1.0
    %v793 = vadd.f32 %v748, 1.0
    %v794 = vadd.f32 %v750, 1.0
    %v795 = vadd.f32 %v752, 1.0
    %v796 = vadd.f32 %v754, 1.0
    %v797 = vadd.f32 %v756, 1.0
    %v798 = vadd.f32 %v758, 1.0
    %v799 = vadd.f32 %v760, 1.0
    %v800 = vadd.f32 %v762, 1.0
    %v801 = vadd.f32 %v764, 1.0
    %v802 = vadd.f32 %v766, 1.0
    %v803 = vadd.f32 %v768, 1.0
    %v804 = vadd.f32 %v770, 1.0
    %v805 = vadd.f32 %v772, 1.0
    %v806 = vadd.f32 %v774, 1.0
    %v807 = vlog2.pop %v775
    %v808 = vmul.f32 %v807, 0.6931472
    %v809 = vlog2.pop %v776
    %v810 = vmul.f32 %v809, 0.6931472
    %v811 = vlog2.pop %v777
    %v812 = vmul.f32 %v811, 0.6931472
    %v813 = vlog2.pop %v778
    %v814 = vmul.f32 %v813, 0.6931472
    %v815 = vlog2.pop %v779
    %v816 = vmul.f32 %v815, 0.6931472
    %v817 = vlog2.pop %v780
    %v818 = vmul.f32 %v817, 0.6931472
    %v819 = vlog2.pop %v781
    %v820 = vmul.f32 %v819, 0.6931472
    %v821 = vlog2.pop %v782
    %v822 = vmul.f32 %v821, 0.6931472
    %v823 = vlog2.pop %v783
    %v824 = vmul.f32 %v823, 0.6931472
    %v825 = vlog2.pop %v784
    %v826 = vmul.f32 %v825, 0.6931472
    %v827 = vlog2.pop %v785
    %v828 = vmul.f32 %v827, 0.6931472
    %v829 = vlog2.pop %v786
    %v830 = vmul.f32 %v829, 0.6931472
    %v831 = vlog2.pop %v787
    %v832 = vmul.f32 %v831, 0.6931472
    %v833 = vlog2.pop %v788
    %v834 = vmul.f32 %v833, 0.6931472
    %v835 = vlog2.pop %v789
    %v836 = vmul.f32 %v835, 0.6931472
    %v837 = vlog2.pop %v790
    %v838 = vmul.f32 %v837, 0.6931472
    %v839 = vlog2.pop %v791
    %v840 = vmul.f32 %v839, 0.6931472
    %v841 = vlog2.pop %v792
    %v842 = vmul.f32 %v841, 0.6931472
    %v843 = vlog2.pop %v793
    %v844 = vmul.f32 %v843, 0.6931472
    %v845 = vlog2.pop %v794
    %v846 = vmul.f32 %v845, 0.6931472
    %v847 = vlog2.pop %v795
    %v848 = vmul.f32 %v847, 0.6931472
    %v849 = vlog2.pop %v796
    %v850 = vmul.f32 %v849, 0.6931472
    %v851 = vlog2.pop %v797
    %v852 = vmul.f32 %v851, 0.6931472
    %v853 = vlog2.pop %v798
    %v854 = vmul.f32 %v853, 0.6931472
    %v855 = vlog2.pop %v799
    %v856 = vmul.f32 %v855, 0.6931472
    %v857 = vlog2.pop %v800
    %v858 = vmul.f32 %v857, 0.6931472
    %v859 = vlog2.pop %v801
    %v860 = vmul.f32 %v859, 0.6931472
    %v861 = vlog2.pop %v802
    %v862 = vmul.f32 %v861, 0.6931472
    %v863 = vlog2.pop %v803
    %v864 = vmul.f32 %v863, 0.6931472
    %v865 = vlog2.pop %v804
    %v866 = vmul.f32 %v865, 0.6931472
    %v867 = vlog2.pop %v805
    %v868 = vmul.f32 %v867, 0.6931472
    %v869 = vlog2.pop %v806
    %v870 = vmul.f32 %v869, 0.6931472
    %v871 = vadd.f32 %v615, %v808
    %v872 = vadd.f32 %v616, %v810
    %v873 = vadd.f32 %v617, %v812
    %v874 = vadd.f32 %v618, %v814
    %v875 = vadd.f32 %v619, %v816
    %v876 = vadd.f32 %v620, %v818
    %v877 = vadd.f32 %v621, %v820
    %v878 = vadd.f32 %v622, %v822
    %v879 = vadd.f32 %v623, %v824
    %v880 = vadd.f32 %v624, %v826
    %v881 = vadd.f32 %v625, %v828
    %v882 = vadd.f32 %v626, %v830
    %v883 = vadd.f32 %v627, %v832
    %v884 = vadd.f32 %v628, %v834
    %v885 = vadd.f32 %v629, %v836
    %v886 = vadd.f32 %v630, %v838
    %v887 = vadd.f32 %v631, %v840
    %v888 = vadd.f32 %v632, %v842
    %v889 = vadd.f32 %v633, %v844
    %v890 = vadd.f32 %v634, %v846
    %v891 = vadd.f32 %v635, %v848
    %v892 = vadd.f32 %v636, %v850
    %v893 = vadd.f32 %v637, %v852
    %v894 = vadd.f32 %v638, %v854
    %v895 = vadd.f32 %v639, %v856
    %v896 = vadd.f32 %v640, %v858
    %v897 = vadd.f32 %v641, %v860
    %v898 = vadd.f32 %v642, %v862
    %v899 = vadd.f32 %v643, %v864
    %v900 = vadd.f32 %v644, %v866
    %v901 = vadd.f32 %v645, %v868
    %v902 = vadd.f32 %v646, %v870
    %v903 = vld [vmem:[%s5] sm:$0xff]
    %v904 = vld [vmem:[%s5 + $0x8] sm:$0xff]
    %v905 = vld [vmem:[%s5 + $0x10] sm:$0xff]
    %v906 = vld [vmem:[%s5 + $0x18] sm:$0xff]
    %v907 = vld [vmem:[%s5 + $0x20] sm:$0xff]
    %v908 = vld [vmem:[%s5 + $0x28] sm:$0xff]
    %v909 = vld [vmem:[%s5 + $0x30] sm:$0xff]
    %v910 = vld [vmem:[%s5 + $0x38] sm:$0xff]
    %v911 = vld [vmem:[%s5 + $0x40] sm:$0xff]
    %v912 = vld [vmem:[%s5 + $0x48] sm:$0xff]
    %v913 = vld [vmem:[%s5 + $0x50] sm:$0xff]
    %v914 = vld [vmem:[%s5 + $0x58] sm:$0xff]
    %v915 = vld [vmem:[%s5 + $0x60] sm:$0xff]
    %v916 = vld [vmem:[%s5 + $0x68] sm:$0xff]
    %v917 = vld [vmem:[%s5 + $0x70] sm:$0xff]
    %v918 = vld [vmem:[%s5 + $0x78] sm:$0xff]
    %v919 = vld [vmem:[%s5 + $0x80] sm:$0xff]
    %v920 = vld [vmem:[%s5 + $0x88] sm:$0xff]
    %v921 = vld [vmem:[%s5 + $0x90] sm:$0xff]
    %v922 = vld [vmem:[%s5 + $0x98] sm:$0xff]
    %v923 = vld [vmem:[%s5 + $0xa0] sm:$0xff]
    %v924 = vld [vmem:[%s5 + $0xa8] sm:$0xff]
    %v925 = vld [vmem:[%s5 + $0xb0] sm:$0xff]
    %v926 = vld [vmem:[%s5 + $0xb8] sm:$0xff]
    %v927 = vld [vmem:[%s5 + $0xc0] sm:$0xff]
    %v928 = vld [vmem:[%s5 + $0xc8] sm:$0xff]
    %v929 = vld [vmem:[%s5 + $0xd0] sm:$0xff]
    %v930 = vld [vmem:[%s5 + $0xd8] sm:$0xff]
    %v931 = vld [vmem:[%s5 + $0xe0] sm:$0xff]
    %v932 = vld [vmem:[%s5 + $0xe8] sm:$0xff]
    %v933 = vld [vmem:[%s5 + $0xf0] sm:$0xff]
    %v934 = vld [vmem:[%s5 + $0xf8] sm:$0xff]
    %v935 = vmul.f32 %v871, %v903
    %v936 = vmul.f32 %v872, %v904
    %v937 = vmul.f32 %v873, %v905
    %v938 = vmul.f32 %v874, %v906
    %v939 = vmul.f32 %v875, %v907
    %v940 = vmul.f32 %v876, %v908
    %v941 = vmul.f32 %v877, %v909
    %v942 = vmul.f32 %v878, %v910
    %v943 = vmul.f32 %v879, %v911
    %v944 = vmul.f32 %v880, %v912
    %v945 = vmul.f32 %v881, %v913
    %v946 = vmul.f32 %v882, %v914
    %v947 = vmul.f32 %v883, %v915
    %v948 = vmul.f32 %v884, %v916
    %v949 = vmul.f32 %v885, %v917
    %v950 = vmul.f32 %v886, %v918
    %v951 = vmul.f32 %v887, %v919
    %v952 = vmul.f32 %v888, %v920
    %v953 = vmul.f32 %v889, %v921
    %v954 = vmul.f32 %v890, %v922
    %v955 = vmul.f32 %v891, %v923
    %v956 = vmul.f32 %v892, %v924
    %v957 = vmul.f32 %v893, %v925
    %v958 = vmul.f32 %v894, %v926
    %v959 = vmul.f32 %v895, %v927
    %v960 = vmul.f32 %v896, %v928
    %v961 = vmul.f32 %v897, %v929
    %v962 = vmul.f32 %v898, %v930
    %v963 = vmul.f32 %v899, %v931
    %v964 = vmul.f32 %v900, %v932
    %v965 = vmul.f32 %v901, %v933
    %v966 = vmul.f32 %v902, %v934
    %vm967 = vcmask 7168
    %v968 = vsel %vm967, %v935, 0.0
    %v969 = vsel %vm967, %v936, 0.0
    %v970 = vadd.f32 %v968, %v969
    %v971 = vsel %vm967, %v937, 0.0
    %v972 = vadd.f32 %v970, %v971
    %v973 = vsel %vm967, %v938, 0.0
    %v974 = vadd.f32 %v972, %v973
    %v975 = vsel %vm967, %v939, 0.0
    %v976 = vadd.f32 %v974, %v975
    %v977 = vsel %vm967, %v940, 0.0
    %v978 = vadd.f32 %v976, %v977
    %v979 = vsel %vm967, %v941, 0.0
    %v980 = vadd.f32 %v978, %v979
    %v981 = vsel %vm967, %v942, 0.0
    %v982 = vadd.f32 %v980, %v981
    %v983 = vsel %vm967, %v943, 0.0
    %v984 = vadd.f32 %v982, %v983
    %v985 = vsel %vm967, %v944, 0.0
    %v986 = vadd.f32 %v984, %v985
    %v987 = vsel %vm967, %v945, 0.0
    %v988 = vadd.f32 %v986, %v987
    %v989 = vsel %vm967, %v946, 0.0
    %v990 = vadd.f32 %v988, %v989
    %v991 = vsel %vm967, %v947, 0.0
    %v992 = vadd.f32 %v990, %v991
    %v993 = vsel %vm967, %v948, 0.0
    %v994 = vadd.f32 %v992, %v993
    %v995 = vsel %vm967, %v949, 0.0
    %v996 = vadd.f32 %v994, %v995
    %v997 = vsel %vm967, %v950, 0.0
    %v998 = vadd.f32 %v996, %v997
    %v999 = vsel %vm967, %v951, 0.0
    %v1000 = vadd.f32 %v998, %v999
    %v1001 = vsel %vm967, %v952, 0.0
    %v1002 = vadd.f32 %v1000, %v1001
    %v1003 = vsel %vm967, %v953, 0.0
    %v1004 = vadd.f32 %v1002, %v1003
    %v1005 = vsel %vm967, %v954, 0.0
    %v1006 = vadd.f32 %v1004, %v1005
    %v1007 = vsel %vm967, %v955, 0.0
    %v1008 = vadd.f32 %v1006, %v1007
    %v1009 = vsel %vm967, %v956, 0.0
    %v1010 = vadd.f32 %v1008, %v1009
    %v1011 = vsel %vm967, %v957, 0.0
    %v1012 = vadd.f32 %v1010, %v1011
    %v1013 = vsel %vm967, %v958, 0.0
    %v1014 = vadd.f32 %v1012, %v1013
    %v1015 = vsel %vm967, %v959, 0.0
    %v1016 = vadd.f32 %v1014, %v1015
    %v1017 = vsel %vm967, %v960, 0.0
    %v1018 = vadd.f32 %v1016, %v1017
    %v1019 = vsel %vm967, %v961, 0.0
    %v1020 = vadd.f32 %v1018, %v1019
    %v1021 = vsel %vm967, %v962, 0.0
    %v1022 = vadd.f32 %v1020, %v1021
    %v1023 = vsel %vm967, %v963, 0.0
    %v1024 = vadd.f32 %v1022, %v1023
    %v1025 = vsel %vm967, %v964, 0.0
    %v1026 = vadd.f32 %v1024, %v1025
    %v1027 = vsel %vm967, %v965, 0.0
    %v1028 = vadd.f32 %v1026, %v1027
    %v1029 = vsel %vm967, %v966, 0.0
    %v1030 = vadd.f32 %v1028, %v1029
    %1031 = vadd.xlane.f32.xlu0 %v1030
    %v1032 = vpop.xlane.xlu0 %1031
    %v1033 = vrot.slane %v1032, 4
    %v1034 = vadd.f32 %v1032, %v1033
    %v1035 = vrot.slane %v1034, 2
    %v1036 = vadd.f32 %v1034, %v1035
    %v1037 = vrot.slane %v1036, 1
    %v1038 = vadd.f32 %v1036, %v1037
    %s1039 = vtos %v1038
    %v1040 = vstv %s1039
    %1041 = vst.msk [vmem:[#allocation4] sm:$0x1] %vm453, %v1040
    // Predicated region
    $region26: #{tpu_custom_call.1} parent=1 // pred_check
      _
    $region27: #{tpu_custom_call.1} parent=1 // pred_check_branch
      %1043 = sbr.rel (0) target = $region29
    $region28: #{tpu_custom_call.1} parent=1 // pred_region
      %s1045 = ssub.s32 16, 16
      %1046 = vsyncadd [#allocation3], %s1045
      %s1048 = sshll.u32 [#allocation2], 4
      %s1049 = int_to_ptr.vmem [resolvable:$true] %s1048
      %1051 = dma.vmem_to_hbm [thread:$0]  %s1049, 16, %s6, [#allocation3]
    $region29: #{tpu_custom_call.1} parent=1 // pred_fallthru
      _
    // Predicated region
    $region30: #{tpu_custom_call.1} parent=1 // pred_check
      _
    $region31: #{tpu_custom_call.1} parent=1 // pred_check_branch
      %1053 = sbr.rel (0) target = $region33
    $region32: #{tpu_custom_call.1} parent=1 // pred_region
      %s1055 = ssub.s32 16, 16
      %1056 = vsyncadd [#allocation5], %s1055
      %s1058 = sshll.u32 [#allocation4], 4
      %s1059 = int_to_ptr.vmem [resolvable:$true] %s1058
      %1061 = dma.vmem_to_hbm [thread:$0]  %s1059, 16, %s7, [#allocation5]
    $region33: #{tpu_custom_call.1} parent=1 // pred_fallthru
      _
    // Predicated region
    $region34: #{tpu_custom_call.1} parent=1 // pred_check
      _
    $region35: #{tpu_custom_call.1} parent=1 // pred_check_branch
      %1063 = sbr.rel (0) target = $region37
    $region36: #{tpu_custom_call.1} parent=1 // pred_region
      %1064 = dma.done [#allocation3], 16
    $region37: #{tpu_custom_call.1} parent=1 // pred_fallthru
      _
    // Predicated region
    $region38: #{tpu_custom_call.1} parent=1 // pred_check
      _
    $region39: #{tpu_custom_call.1} parent=1 // pred_check_branch
      %1066 = sbr.rel (0) target = $region41
    $region40: #{tpu_custom_call.1} parent=1 // pred_region
      %1067 = dma.done [#allocation5], 16
    $region41: #{tpu_custom_call.1} parent=1 // pred_fallthru
      _
    %1068 = vsyncpa [#allocation3], 1
    %1069 = vsyncpa [#allocation5], 1

</llo_original>
